<compile_context>
chip_gen: v6e
topology: v6e:2x2x1
jax: 0.10.0
libtpu: 0.0.40
codegen_flags: <defaults>
</compile_context>

<pallas_src>
import functools

import jax
import jax.numpy as jnp
from jax.experimental import pallas as pl
from jax.experimental.pallas import tpu as pltpu

TAU = 5.0  # kept for reference; a positive tau never changes the argmax


def _gumbel_argmax_mlp_kernel(
    x_ref, g0_ref, g1_ref,                      # per-row-block tensors
    w1_ref, b1_ref, w2_ref, b2_ref,             # VMEM-resident weights
    wa0_ref, wa1_ref,                           # act-head columns (hidden, 1)
    sc_ref,                                     # SMEM scalars: [a1, a2, ba0, ba1, mean, inv_std]
    out_ref,                                    # (tn, 1) int32 argmax column
    *, input_norm: bool,
):
    a1 = sc_ref[0]
    a2 = sc_ref[1]
    ba0 = sc_ref[2]
    ba1 = sc_ref[3]

    x = x_ref[...]
    if input_norm:
        # torch: (x - x.mean()) / (x.std(unbiased=True) + 1e-9); scalars are
        # precomputed in the wrapper, element-wise math kept in f32.
        xf = x.astype(jnp.float32)
        xf = (xf - sc_ref[4]) * sc_ref[5]
        x = xf.astype(x_ref.dtype)

    # linear1 + PReLU (bf16 matmul inputs, f32 accumulate, f32 element-wise)
    h = jnp.dot(x, w1_ref[...], preferred_element_type=jnp.float32) + b1_ref[...]
    h = jnp.where(h >= 0.0, h, a1 * h)
    h = h.astype(w2_ref.dtype)

    # linear2 + PReLU
    h = jnp.dot(h, w2_ref[...], preferred_element_type=jnp.float32) + b2_ref[...]
    h = jnp.where(h >= 0.0, h, a2 * h)
    h = h.astype(wa0_ref.dtype)

    # act head: the two class logits, plus their Gumbel noise.
    z0 = jnp.dot(h, wa0_ref[...], preferred_element_type=jnp.float32) + ba0 + g0_ref[...]
    z1 = jnp.dot(h, wa1_ref[...], preferred_element_type=jnp.float32) + ba1 + g1_ref[...]

    # gumbel_softmax(tau) is monotone in (logit + g), so the hard one-hot is
    # just argmax(logit + g).  Strict '>' makes index 0 win exact ties, the
    # same first-max tie-break as torch .max(dim=-1).
    out_ref[...] = (z1 > z0).astype(out_ref.dtype)


def prepare_params(params, compute_dtype=jnp.bfloat16):
    """One-time parameter prep: transpose torch-layout weights, cast MXU
    inputs to bf16, split the 2-wide act head into two columns."""
    w1, b1, a1, w2, b2, a2, wa, ba = params
    w1f = jnp.asarray(w1, jnp.float32)
    w2f = jnp.asarray(w2, jnp.float32)
    waf = jnp.asarray(wa, jnp.float32)
    return {
        "w1": w1f.T.astype(compute_dtype),                    # (in, hidden)
        "b1": jnp.asarray(b1, jnp.float32).reshape(1, -1),    # (1, hidden)
        "w2": w2f.T.astype(compute_dtype),                    # (hidden, hidden)
        "b2": jnp.asarray(b2, jnp.float32).reshape(1, -1),    # (1, hidden)
        "wa0": waf[0].reshape(-1, 1).astype(compute_dtype),   # (hidden, 1)
        "wa1": waf[1].reshape(-1, 1).astype(compute_dtype),   # (hidden, 1)
        "ba": jnp.asarray(ba, jnp.float32).reshape(2),        # (2,)
        "prelu": jnp.stack([jnp.asarray(a1, jnp.float32).reshape(()),
                            jnp.asarray(a2, jnp.float32).reshape(())]),
    }


def gumbel_softmax_mlp(x, prepped, key, *, input_norm=False, block_n=4096):
    """Full nnGradGumbelSoftmax forward; returns the (N, 2) hard one-hot."""
    lead = x.shape[:-1]
    f = x.shape[-1]
    x32 = jnp.asarray(x, jnp.float32).reshape(-1, f)
    n = x32.shape[0]

    hidden = prepped["w1"].shape[1]
    cdt = prepped["w1"].dtype
    assert prepped["w1"].shape[0] == f

    # Global mean / unbiased std computed in the wrapper (XLA); passed to the
    # kernel as SMEM scalars so the kernel stays tileable over N.
    if input_norm:
        mean = jnp.mean(x32)
        inv = 1.0 / (jnp.std(x32, ddof=1) + 1e-9)
    else:
        mean = jnp.float32(0.0)
        inv = jnp.float32(1.0)
    scalars = jnp.concatenate(
        [prepped["prelu"], prepped["ba"],
         jnp.stack([mean, inv]).astype(jnp.float32)])          # (6,) f32

    # Gumbel noise g = -log(-log(U)), sampled outside the kernel.
    g = jax.random.gumbel(key, (n, 2), jnp.float32)
    g0, g1 = g[:, 0:1], g[:, 1:2]

    x_in = x32.astype(cdt)

    # Row-block size: big blocks amortize per-step overhead; keep sublane
    # aligned; remainder blocks are handled by cdiv + Pallas boundary masking.
    tn = min(block_n, n)
    if tn != n:
        tn = max(8, (tn // 8) * 8)
    grid = (pl.cdiv(n, tn),)

    def row_blk(last):
        return pl.BlockSpec((tn, last), lambda i: (i, 0))

    def resident(shape):  # constant index_map -> stays VMEM-resident
        return pl.BlockSpec(shape, lambda i: (0, 0))

    smem = pl.BlockSpec(memory_space=pltpu.MemorySpace.SMEM)

    kernel = functools.partial(_gumbel_argmax_mlp_kernel, input_norm=input_norm)

    idx = pl.pallas_call(
        kernel,
        out_shape=jax.ShapeDtypeStruct((n, 1), jnp.int32),
        grid=grid,
        in_specs=[
            row_blk(f),                  # x
            row_blk(1),                  # g0
            row_blk(1),                  # g1
            resident((f, hidden)),       # w1
            resident((1, hidden)),       # b1
            resident((hidden, hidden)),  # w2
            resident((1, hidden)),       # b2
            resident((hidden, 1)),       # wa0
            resident((hidden, 1)),       # wa1
            smem,                        # scalars
        ],
        out_specs=pl.BlockSpec((tn, 1), lambda i: (i, 0)),
        compiler_params=pltpu.CompilerParams(
            dimension_semantics=("parallel",),
            vmem_limit_bytes=32 * 1024 * 1024),
    )(x_in, g0, g1,
      prepped["w1"], prepped["b1"], prepped["w2"], prepped["b2"],
      prepped["wa0"], prepped["wa1"], scalars)

    # Expand the argmax column to the (N, 2) hard one-hot outside the kernel
    # (trivial XLA op; keeps the kernel's HBM writeback minimal).
    y_hard = (idx == jnp.arange(2, dtype=jnp.int32)[None, :]).astype(jnp.float32)
    return y_hard.reshape(*lead, 2)


def init_params(key, in_features, hidden):
    """Deterministic init mirroring nn.Linear / nn.PReLU defaults."""
    def linear_init(k, fan_in, fan_out):
        bound = 1.0 / jnp.sqrt(jnp.float32(fan_in))
        kw, kb = jax.random.split(k)
        w = jax.random.uniform(kw, (fan_out, fan_in), jnp.float32, -bound, bound)
        b = jax.random.uniform(kb, (fan_out,), jnp.float32, -bound, bound)
        return w, b

    k1, k2, k3 = jax.random.split(key, 3)
    w1, b1 = linear_init(k1, in_features, hidden)
    w2, b2 = linear_init(k2, hidden, hidden)
    wa, ba = linear_init(k3, hidden, 2)       # self.act -> weight_act / bias_act
    a1 = jnp.float32(0.25)                    # nn.PReLU() default
    a2 = jnp.float32(0.25)
    return (w1, b1, a1, w2, b2, a2, wa, ba)


def reference_forward(x, params, g, input_norm):
    """Pure-JAX f32 replica of the PyTorch forward (same noise g)."""
    w1, b1, a1, w2, b2, a2, wa, ba = params
    x = jnp.asarray(x, jnp.float32)
    if input_norm:
        x = (x - jnp.mean(x)) / (jnp.std(x, ddof=1) + 1e-9)
    h = x @ jnp.asarray(w1, jnp.float32).T + b1
    h = jnp.where(h >= 0.0, h, a1 * h)
    h = h @ jnp.asarray(w2, jnp.float32).T + b2
    h = jnp.where(h >= 0.0, h, a2 * h)
    logits = h @ jnp.asarray(wa, jnp.float32).T + ba
    y = jax.nn.softmax((logits + g) / TAU, axis=-1)
    ind = jnp.argmax(y, axis=-1)
    return jax.nn.one_hot(ind, 2, dtype=jnp.float32)


if __name__ == "__main__":
    key = jax.random.PRNGKey(0)
    k_x, k_p, k_g = jax.random.split(key, 3)

    N, IN, HIDDEN = 256, 32, 32
    BLOCK_N = 128                       # -> grid (2,), exercises the tiling path
    x = jax.random.normal(k_x, (N, IN), jnp.float32)
    params = init_params(k_p, IN, HIDDEN)
    prepped = prepare_params(params)

    g_same = jax.random.gumbel(k_g, (N, 2), jnp.float32)  # same noise the wrapper draws

    for norm_flag in (False, True):
        y_hard = gumbel_softmax_mlp(x, prepped, k_g,
                                    input_norm=norm_flag, block_n=BLOCK_N)
        y_hard = jax.block_until_ready(y_hard)

        assert y_hard.shape == (N, 2)
        assert y_hard.dtype == jnp.float32
        # every row must be a valid one-hot
        assert bool(jnp.all(jnp.sum(y_hard, axis=-1) == 1.0))
        assert bool(jnp.all((y_hard == 0.0) | (y_hard == 1.0)))

        # agreement with the f32 reference (bf16 matmul inputs may flip a
        # handful of near-boundary decisions, hence a tolerance)
        y_ref = reference_forward(x, params, g_same, norm_flag)
        agree = float(jnp.mean(jnp.all(y_hard == y_ref, axis=-1)))
        assert agree > 0.95, f"agreement {agree} too low (input_norm={norm_flag})"

    print("KERNEL_OK")
</pallas_src>

<mosaic_0001>
module attributes {stable_mosaic.version = 11 : i64} {
  func.func @_gumbel_argmax_mlp_kernel(%arg0: i32, %arg1: memref<128x32xbf16, #tpu.memory_space<vmem>>, %arg2: memref<128x1xf32, #tpu.memory_space<vmem>>, %arg3: memref<128x1xf32, #tpu.memory_space<vmem>>, %arg4: memref<32x32xbf16, #tpu.memory_space<vmem>>, %arg5: memref<1x32xf32, #tpu.memory_space<vmem>>, %arg6: memref<32x32xbf16, #tpu.memory_space<vmem>>, %arg7: memref<1x32xf32, #tpu.memory_space<vmem>>, %arg8: memref<32x1xbf16, #tpu.memory_space<vmem>>, %arg9: memref<32x1xbf16, #tpu.memory_space<vmem>>, %arg10: memref<6xf32, #tpu.memory_space<smem>>, %arg11: memref<128x1xi32, #tpu.memory_space<vmem>>) attributes {dimension_semantics = [#tpu.dimension_semantics<parallel>], iteration_bounds = array<i64: 2>, scalar_prefetch = 0 : i64, scratch_operands = 0 : i64, tpu.core_type = #tpu.core_type<tc>, window_params = [{transform_indices = @transform_0, window_bounds = array<i64: 128, 32>}, {transform_indices = @transform_1, window_bounds = array<i64: 128, 1>}, {transform_indices = @transform_2, window_bounds = array<i64: 128, 1>}, {pipeline_mode = #tpu.pipeline_mode<synchronous>, transform_indices = @transform_3, window_bounds = array<i64: 32, 32>}, {pipeline_mode = #tpu.pipeline_mode<synchronous>, transform_indices = @transform_4, window_bounds = array<i64: 1, 32>}, {pipeline_mode = #tpu.pipeline_mode<synchronous>, transform_indices = @transform_5, window_bounds = array<i64: 32, 32>}, {pipeline_mode = #tpu.pipeline_mode<synchronous>, transform_indices = @transform_6, window_bounds = array<i64: 1, 32>}, {pipeline_mode = #tpu.pipeline_mode<synchronous>, transform_indices = @transform_7, window_bounds = array<i64: 32, 1>}, {pipeline_mode = #tpu.pipeline_mode<synchronous>, transform_indices = @transform_8, window_bounds = array<i64: 32, 1>}, {transform_indices = @transform_9, window_bounds = array<i64: 6>}, {transform_indices = @transform_10, window_bounds = array<i64: 128, 1>}]} {
    %c0 = arith.constant 0 : index
    %0 = memref.load %arg10[%c0] : memref<6xf32, #tpu.memory_space<smem>>
    %c1 = arith.constant 1 : index
    %1 = memref.load %arg10[%c1] : memref<6xf32, #tpu.memory_space<smem>>
    %c2 = arith.constant 2 : index
    %2 = memref.load %arg10[%c2] : memref<6xf32, #tpu.memory_space<smem>>
    %c3 = arith.constant 3 : index
    %3 = memref.load %arg10[%c3] : memref<6xf32, #tpu.memory_space<smem>>
    %c0_0 = arith.constant 0 : index
    %c0_1 = arith.constant 0 : index
    %4 = vector.load %arg1[%c0_0, %c0_1] : memref<128x32xbf16, #tpu.memory_space<vmem>>, vector<128x32xbf16>
    %c0_2 = arith.constant 0 : index
    %c0_3 = arith.constant 0 : index
    %5 = vector.load %arg4[%c0_2, %c0_3] : memref<32x32xbf16, #tpu.memory_space<vmem>>, vector<32x32xbf16>
    %cst = arith.constant dense<0.000000e+00> : vector<128x32xf32>
    %6 = tpu.matmul %4, %5, %cst {dimension_numbers = #tpu.dot_dimension_numbers<[1], [0], [0], [1], [0, 0, 1, 1], [], []>} : vector<128x32xbf16>, vector<32x32xbf16>, vector<128x32xf32> -> vector<128x32xf32>
    %c0_4 = arith.constant 0 : index
    %c0_5 = arith.constant 0 : index
    %7 = vector.load %arg5[%c0_4, %c0_5] : memref<1x32xf32, #tpu.memory_space<vmem>>, vector<1x32xf32>
    %8 = vector.broadcast %7 : vector<1x32xf32> to vector<128x32xf32>
    %9 = arith.addf %6, %8 : vector<128x32xf32>
    %cst_6 = arith.constant 0.000000e+00 : f32
    %10 = vector.broadcast %cst_6 : f32 to vector<128x32xf32>
    %11 = arith.cmpf oge, %9, %10 : vector<128x32xf32>
    %12 = vector.broadcast %0 : f32 to vector<128x32xf32>
    %13 = arith.mulf %12, %9 : vector<128x32xf32>
    %14 = arith.select %11, %9, %13 : vector<128x32xi1>, vector<128x32xf32>
    %15 = arith.truncf %14 : vector<128x32xf32> to vector<128x32xbf16>
    %c0_7 = arith.constant 0 : index
    %c0_8 = arith.constant 0 : index
    %16 = vector.load %arg6[%c0_7, %c0_8] : memref<32x32xbf16, #tpu.memory_space<vmem>>, vector<32x32xbf16>
    %cst_9 = arith.constant dense<0.000000e+00> : vector<128x32xf32>
    %17 = tpu.matmul %15, %16, %cst_9 {dimension_numbers = #tpu.dot_dimension_numbers<[1], [0], [0], [1], [0, 0, 1, 1], [], []>} : vector<128x32xbf16>, vector<32x32xbf16>, vector<128x32xf32> -> vector<128x32xf32>
    %c0_10 = arith.constant 0 : index
    %c0_11 = arith.constant 0 : index
    %18 = vector.load %arg7[%c0_10, %c0_11] : memref<1x32xf32, #tpu.memory_space<vmem>>, vector<1x32xf32>
    %19 = vector.broadcast %18 : vector<1x32xf32> to vector<128x32xf32>
    %20 = arith.addf %17, %19 : vector<128x32xf32>
    %cst_12 = arith.constant 0.000000e+00 : f32
    %21 = vector.broadcast %cst_12 : f32 to vector<128x32xf32>
    %22 = arith.cmpf oge, %20, %21 : vector<128x32xf32>
    %23 = vector.broadcast %1 : f32 to vector<128x32xf32>
    %24 = arith.mulf %23, %20 : vector<128x32xf32>
    %25 = arith.select %22, %20, %24 : vector<128x32xi1>, vector<128x32xf32>
    %26 = arith.truncf %25 : vector<128x32xf32> to vector<128x32xbf16>
    %c0_13 = arith.constant 0 : index
    %c0_14 = arith.constant 0 : index
    %27 = vector.load %arg8[%c0_13, %c0_14] : memref<32x1xbf16, #tpu.memory_space<vmem>>, vector<32x1xbf16>
    %cst_15 = arith.constant dense<0.000000e+00> : vector<128x1xf32>
    %28 = tpu.matmul %26, %27, %cst_15 {dimension_numbers = #tpu.dot_dimension_numbers<[1], [0], [0], [1], [0, 0, 1, 1], [], []>} : vector<128x32xbf16>, vector<32x1xbf16>, vector<128x1xf32> -> vector<128x1xf32>
    %29 = vector.broadcast %2 : f32 to vector<128x1xf32>
    %30 = arith.addf %28, %29 : vector<128x1xf32>
    %c0_16 = arith.constant 0 : index
    %c0_17 = arith.constant 0 : index
    %31 = vector.load %arg2[%c0_16, %c0_17] : memref<128x1xf32, #tpu.memory_space<vmem>>, vector<128x1xf32>
    %32 = arith.addf %30, %31 : vector<128x1xf32>
    %c0_18 = arith.constant 0 : index
    %c0_19 = arith.constant 0 : index
    %33 = vector.load %arg9[%c0_18, %c0_19] : memref<32x1xbf16, #tpu.memory_space<vmem>>, vector<32x1xbf16>
    %cst_20 = arith.constant dense<0.000000e+00> : vector<128x1xf32>
    %34 = tpu.matmul %26, %33, %cst_20 {dimension_numbers = #tpu.dot_dimension_numbers<[1], [0], [0], [1], [0, 0, 1, 1], [], []>} : vector<128x32xbf16>, vector<32x1xbf16>, vector<128x1xf32> -> vector<128x1xf32>
    %35 = vector.broadcast %3 : f32 to vector<128x1xf32>
    %36 = arith.addf %34, %35 : vector<128x1xf32>
    %c0_21 = arith.constant 0 : index
    %c0_22 = arith.constant 0 : index
    %37 = vector.load %arg3[%c0_21, %c0_22] : memref<128x1xf32, #tpu.memory_space<vmem>>, vector<128x1xf32>
    %38 = arith.addf %36, %37 : vector<128x1xf32>
    %39 = arith.cmpf ogt, %38, %32 : vector<128x1xf32>
    %40 = arith.extui %39 : vector<128x1xi1> to vector<128x1xi32>
    %c0_23 = arith.constant 0 : index
    %c0_24 = arith.constant 0 : index
    %41 = vector.load %arg11[%c0_23, %c0_24] : memref<128x1xi32, #tpu.memory_space<vmem>>, vector<128x1xi32>
    tpu.vector_store %arg11[%c0_23, %c0_24], %40 {strides = array<i32>} : memref<128x1xi32, #tpu.memory_space<vmem>>, vector<128x1xi32>,
    return
  }
  func.func @transform_0(%arg0: i32) -> (i32, i32) {
    %c0_i32 = arith.constant 0 : i32
    %c0_i32_0 = arith.constant 0 : i32
    return %arg0, %c0_i32 : i32, i32
  }
  func.func @transform_1(%arg0: i32) -> (i32, i32) {
    %c0_i32 = arith.constant 0 : i32
    %c0_i32_0 = arith.constant 0 : i32
    return %arg0, %c0_i32 : i32, i32
  }
  func.func @transform_2(%arg0: i32) -> (i32, i32) {
    %c0_i32 = arith.constant 0 : i32
    %c0_i32_0 = arith.constant 0 : i32
    return %arg0, %c0_i32 : i32, i32
  }
  func.func @transform_3(%arg0: i32) -> (i32, i32) {
    %c0_i32 = arith.constant 0 : i32
    %c0_i32_0 = arith.constant 0 : i32
    %c0_i32_1 = arith.constant 0 : i32
    return %c0_i32, %c0_i32_0 : i32, i32
  }
  func.func @transform_4(%arg0: i32) -> (i32, i32) {
    %c0_i32 = arith.constant 0 : i32
    %c0_i32_0 = arith.constant 0 : i32
    %c0_i32_1 = arith.constant 0 : i32
    return %c0_i32, %c0_i32_0 : i32, i32
  }
  func.func @transform_5(%arg0: i32) -> (i32, i32) {
    %c0_i32 = arith.constant 0 : i32
    %c0_i32_0 = arith.constant 0 : i32
    %c0_i32_1 = arith.constant 0 : i32
    return %c0_i32, %c0_i32_0 : i32, i32
  }
  func.func @transform_6(%arg0: i32) -> (i32, i32) {
    %c0_i32 = arith.constant 0 : i32
    %c0_i32_0 = arith.constant 0 : i32
    %c0_i32_1 = arith.constant 0 : i32
    return %c0_i32, %c0_i32_0 : i32, i32
  }
  func.func @transform_7(%arg0: i32) -> (i32, i32) {
    %c0_i32 = arith.constant 0 : i32
    %c0_i32_0 = arith.constant 0 : i32
    %c0_i32_1 = arith.constant 0 : i32
    return %c0_i32, %c0_i32_0 : i32, i32
  }
  func.func @transform_8(%arg0: i32) -> (i32, i32) {
    %c0_i32 = arith.constant 0 : i32
    %c0_i32_0 = arith.constant 0 : i32
    %c0_i32_1 = arith.constant 0 : i32
    return %c0_i32, %c0_i32_0 : i32, i32
  }
  func.func @transform_9(%arg0: i32) -> i32 {
    %c0_i32 = arith.constant 0 : i32
    %c0_i32_0 = arith.constant 0 : i32
    return %c0_i32 : i32
  }
  func.func @transform_10(%arg0: i32) -> (i32, i32) {
    %c0_i32 = arith.constant 0 : i32
    %c0_i32_0 = arith.constant 0 : i32
    return %arg0, %c0_i32 : i32, i32
  }
}

</mosaic_0001>

<llo_original>
// kernel: tpu_custom_call.1
$region0: #{tpu_custom_call.1}
  #allocation0 [shape = 'u32[]', space=smem, size = 0x4, offset = 0x4, fixed_abs, tag = 'smem constant byte address 0x4 - core index']
  #allocation1 [shape = 'u32[144,128]{1,0:T(1,128)}', space=vmem, size = 0x12000, scoped, tag = 'internal scratch']
  %s0 = inlined_call_operand.vmem [shape: bf16[256,32], index: 0, kind: input, shape index: {}]
  %s1 = inlined_call_operand.vmem [shape: f32[256,1], index: 1, kind: input, shape index: {}]
  %s2 = inlined_call_operand.vmem [shape: f32[256,1], index: 2, kind: input, shape index: {}]
  %s3 = inlined_call_operand.vmem [shape: bf16[32,32], index: 3, kind: input, shape index: {}]
  %s4 = inlined_call_operand.vmem [shape: f32[1,32], index: 4, kind: input, shape index: {}]
  %s5 = inlined_call_operand.vmem [shape: bf16[32,32], index: 5, kind: input, shape index: {}]
  %s6 = inlined_call_operand.vmem [shape: f32[1,32], index: 6, kind: input, shape index: {}]
  %s7 = inlined_call_operand.vmem [shape: bf16[32,1], index: 7, kind: input, shape index: {}]
  %s8 = inlined_call_operand.vmem [shape: bf16[32,1], index: 8, kind: input, shape index: {}]
  %s9 = inlined_call_operand.vmem [shape: f32[6], index: 9, kind: input, shape index: {}]
  %s10 = inlined_call_operand.vmem [shape: s32[256,1], index: 10, kind: output, shape index: {}]
  %s11 = sld [smem:[#allocation0]]
  $region77: #{tpu_custom_call.1} parent=0
    _
  %s13 = ssub.s32 1, %s11
  %s14 = scalar_select 0, %s13, %s11
  $region1: #{tpu_custom_call.1} parent=0
    #allocation2 [shape = 'u8[512]{0}', space=smem, size = 0x200, scoped, tag = 'input window, operand 9, single buffered']
    #allocation3 [shape = 's32[2]{0}', space=sflag, size = 0x8, scoped, tag = 'scoped memory for tpu_custom_call.1']
    %15 = vsyncpa [#allocation3], 0
    loop: start=0, step=1, limit=4
    $region2: #{tpu_custom_call.1} parent=1 // loop_pre_header
      _
    $region3: #{tpu_custom_call.1} parent=1 // loop_header
      %s17 = sphi 0, %s21
      %p18 = scmp.ge.s32.totalorder %s17, 4
      %s27 = sphi 0, %s29
      %s30 = sphi 0, %s27
      %s31 = sphi 0, %s30
      %s47 = sphi 0, %s31
      %s53 = sphi 0, %s55
      %s56 = sphi 0, %s53
      %s57 = sphi 0, %s56
      %s73 = sphi 0, %s57
      %s79 = sphi 0, %s81
      %s82 = sphi 0, %s79
      %s83 = sphi 0, %s82
      %s99 = sphi 0, %s83
      %s103 = sphi 0, %s103
      %s105 = sphi 0, %s103
      %s106 = sphi 0, %s105
      %s120 = sphi 0, %s106
      %s124 = sphi 0, %s124
      %s126 = sphi 0, %s124
      %s127 = sphi 0, %s126
      %s141 = sphi 0, %s127
      %s145 = sphi 0, %s145
      %s147 = sphi 0, %s145
      %s148 = sphi 0, %s147
      %s162 = sphi 0, %s148
      %s166 = sphi 0, %s166
      %s168 = sphi 0, %s166
      %s169 = sphi 0, %s168
      %s183 = sphi 0, %s169
      %s187 = sphi 0, %s187
      %s189 = sphi 0, %s187
      %s190 = sphi 0, %s189
      %s204 = sphi 0, %s190
      %s208 = sphi 0, %s208
      %s210 = sphi 0, %s208
      %s211 = sphi 0, %s210
      %s225 = sphi 0, %s211
      %s229 = sphi 0, %s229
      %s231 = sphi 0, %s229
      %s232 = sphi 0, %s231
      %s246 = sphi 0, %s232
      %s252 = sphi 0, %s254
      %s255 = sphi 0, %s252
      %s256 = sphi 0, %s255
      %s272 = sphi 0, %s256
    $region4: #{tpu_custom_call.1} parent=1 // loop_header_branch
      %20 = sbr.rel (%p18) target = $region8
    $region5: #{tpu_custom_call.1} parent=1 // loop_body
      %s22 = ssub.s32 %s17, 1
      %s23 = ssub.s32 %s17, 2
      %s24 = sadd.s32 %s17, 1
      %s25 = ssub.s32 %s17, %s24
      %p26 = scmp.eq.s32.totalorder %s25, 0
      %s28 = sadd.s32 %s27, 1
      %s29 = scalar_select %p26, %s27, %s28
      %p32 = pneg %p26
      %p33 = scmp.eq.s32.totalorder %s17, 1
      %p34 = por %p32, %p33
      %p35 = scmp.ne.s32.totalorder %s27, %s30
      %p36 = scmp.eq.s32.totalorder %s17, 0
      %p37 = por %p35, %p36
      %p38 = scmp.ne.s32.totalorder %s27, %s30
      %p39 = scmp.eq.s32.totalorder %s22, 1
      %p40 = por %p38, %p39
      %p41 = scmp.ne.s32.totalorder %s30, %s31
      %p42 = scmp.eq.s32.totalorder %s22, 0
      %p43 = por %p41, %p42
      %p44 = scmp.ne.s32.totalorder %s30, %s31
      %p45 = scmp.eq.s32.totalorder %s23, 1
      %p46 = por %p44, %p45
      %p48 = scmp.ne.s32.totalorder %s31, %s47
      %p49 = scmp.eq.s32.totalorder %s23, 0
      %p50 = por %p48, %p49
      %s51 = ssub.s32 %s17, %s24
      %p52 = scmp.eq.s32.totalorder %s51, 0
      %s54 = sadd.s32 %s53, 1
      %s55 = scalar_select %p52, %s53, %s54
      %p58 = pneg %p52
      %p59 = scmp.eq.s32.totalorder %s17, 1
      %p60 = por %p58, %p59
      %p61 = scmp.ne.s32.totalorder %s53, %s56
      %p62 = scmp.eq.s32.totalorder %s17, 0
      %p63 = por %p61, %p62
      %p64 = scmp.ne.s32.totalorder %s53, %s56
      %p65 = scmp.eq.s32.totalorder %s22, 1
      %p66 = por %p64, %p65
      %p67 = scmp.ne.s32.totalorder %s56, %s57
      %p68 = scmp.eq.s32.totalorder %s22, 0
      %p69 = por %p67, %p68
      %p70 = scmp.ne.s32.totalorder %s56, %s57
      %p71 = scmp.eq.s32.totalorder %s23, 1
      %p72 = por %p70, %p71
      %p74 = scmp.ne.s32.totalorder %s57, %s73
      %p75 = scmp.eq.s32.totalorder %s23, 0
      %p76 = por %p74, %p75
      %s77 = ssub.s32 %s17, %s24
      %p78 = scmp.eq.s32.totalorder %s77, 0
      %s80 = sadd.s32 %s79, 1
      %s81 = scalar_select %p78, %s79, %s80
      %p84 = pneg %p78
      %p85 = scmp.eq.s32.totalorder %s17, 1
      %p86 = por %p84, %p85
      %p87 = scmp.ne.s32.totalorder %s79, %s82
      %p88 = scmp.eq.s32.totalorder %s17, 0
      %p89 = por %p87, %p88
      %p90 = scmp.ne.s32.totalorder %s79, %s82
      %p91 = scmp.eq.s32.totalorder %s22, 1
      %p92 = por %p90, %p91
      %p93 = scmp.ne.s32.totalorder %s82, %s83
      %p94 = scmp.eq.s32.totalorder %s22, 0
      %p95 = por %p93, %p94
      %p96 = scmp.ne.s32.totalorder %s82, %s83
      %p97 = scmp.eq.s32.totalorder %s23, 1
      %p98 = por %p96, %p97
      %p100 = scmp.ne.s32.totalorder %s83, %s99
      %p101 = scmp.eq.s32.totalorder %s23, 0
      %p102 = por %p100, %p101
      %s104 = sadd.s32 %s103, 1
      %p107 = scmp.eq.s32.totalorder %s17, 1
      %p108 = scmp.ne.s32.totalorder %s103, %s105
      %p109 = scmp.eq.s32.totalorder %s17, 0
      %p110 = por %p108, %p109
      %p111 = scmp.ne.s32.totalorder %s103, %s105
      %p112 = scmp.eq.s32.totalorder %s22, 1
      %p113 = por %p111, %p112
      %p114 = scmp.ne.s32.totalorder %s105, %s106
      %p115 = scmp.eq.s32.totalorder %s22, 0
      %p116 = por %p114, %p115
      %p117 = scmp.ne.s32.totalorder %s105, %s106
      %p118 = scmp.eq.s32.totalorder %s23, 1
      %p119 = por %p117, %p118
      %p121 = scmp.ne.s32.totalorder %s106, %s120
      %p122 = scmp.eq.s32.totalorder %s23, 0
      %p123 = por %p121, %p122
      %s125 = sadd.s32 %s124, 1
      %p128 = scmp.eq.s32.totalorder %s17, 1
      %p129 = scmp.ne.s32.totalorder %s124, %s126
      %p130 = scmp.eq.s32.totalorder %s17, 0
      %p131 = por %p129, %p130
      %p132 = scmp.ne.s32.totalorder %s124, %s126
      %p133 = scmp.eq.s32.totalorder %s22, 1
      %p134 = por %p132, %p133
      %p135 = scmp.ne.s32.totalorder %s126, %s127
      %p136 = scmp.eq.s32.totalorder %s22, 0
      %p137 = por %p135, %p136
      %p138 = scmp.ne.s32.totalorder %s126, %s127
      %p139 = scmp.eq.s32.totalorder %s23, 1
      %p140 = por %p138, %p139
      %p142 = scmp.ne.s32.totalorder %s127, %s141
      %p143 = scmp.eq.s32.totalorder %s23, 0
      %p144 = por %p142, %p143
      %s146 = sadd.s32 %s145, 1
      %p149 = scmp.eq.s32.totalorder %s17, 1
      %p150 = scmp.ne.s32.totalorder %s145, %s147
      %p151 = scmp.eq.s32.totalorder %s17, 0
      %p152 = por %p150, %p151
      %p153 = scmp.ne.s32.totalorder %s145, %s147
      %p154 = scmp.eq.s32.totalorder %s22, 1
      %p155 = por %p153, %p154
      %p156 = scmp.ne.s32.totalorder %s147, %s148
      %p157 = scmp.eq.s32.totalorder %s22, 0
      %p158 = por %p156, %p157
      %p159 = scmp.ne.s32.totalorder %s147, %s148
      %p160 = scmp.eq.s32.totalorder %s23, 1
      %p161 = por %p159, %p160
      %p163 = scmp.ne.s32.totalorder %s148, %s162
      %p164 = scmp.eq.s32.totalorder %s23, 0
      %p165 = por %p163, %p164
      %s167 = sadd.s32 %s166, 1
      %p170 = scmp.eq.s32.totalorder %s17, 1
      %p171 = scmp.ne.s32.totalorder %s166, %s168
      %p172 = scmp.eq.s32.totalorder %s17, 0
      %p173 = por %p171, %p172
      %p174 = scmp.ne.s32.totalorder %s166, %s168
      %p175 = scmp.eq.s32.totalorder %s22, 1
      %p176 = por %p174, %p175
      %p177 = scmp.ne.s32.totalorder %s168, %s169
      %p178 = scmp.eq.s32.totalorder %s22, 0
      %p179 = por %p177, %p178
      %p180 = scmp.ne.s32.totalorder %s168, %s169
      %p181 = scmp.eq.s32.totalorder %s23, 1
      %p182 = por %p180, %p181
      %p184 = scmp.ne.s32.totalorder %s169, %s183
      %p185 = scmp.eq.s32.totalorder %s23, 0
      %p186 = por %p184, %p185
      %s188 = sadd.s32 %s187, 1
      %p191 = scmp.eq.s32.totalorder %s17, 1
      %p192 = scmp.ne.s32.totalorder %s187, %s189
      %p193 = scmp.eq.s32.totalorder %s17, 0
      %p194 = por %p192, %p193
      %p195 = scmp.ne.s32.totalorder %s187, %s189
      %p196 = scmp.eq.s32.totalorder %s22, 1
      %p197 = por %p195, %p196
      %p198 = scmp.ne.s32.totalorder %s189, %s190
      %p199 = scmp.eq.s32.totalorder %s22, 0
      %p200 = por %p198, %p199
      %p201 = scmp.ne.s32.totalorder %s189, %s190
      %p202 = scmp.eq.s32.totalorder %s23, 1
      %p203 = por %p201, %p202
      %p205 = scmp.ne.s32.totalorder %s190, %s204
      %p206 = scmp.eq.s32.totalorder %s23, 0
      %p207 = por %p205, %p206
      %s209 = sadd.s32 %s208, 1
      %p212 = scmp.eq.s32.totalorder %s17, 1
      %p213 = scmp.ne.s32.totalorder %s208, %s210
      %p214 = scmp.eq.s32.totalorder %s17, 0
      %p215 = por %p213, %p214
      %p216 = scmp.ne.s32.totalorder %s208, %s210
      %p217 = scmp.eq.s32.totalorder %s22, 1
      %p218 = por %p216, %p217
      %p219 = scmp.ne.s32.totalorder %s210, %s211
      %p220 = scmp.eq.s32.totalorder %s22, 0
      %p221 = por %p219, %p220
      %p222 = scmp.ne.s32.totalorder %s210, %s211
      %p223 = scmp.eq.s32.totalorder %s23, 1
      %p224 = por %p222, %p223
      %p226 = scmp.ne.s32.totalorder %s211, %s225
      %p227 = scmp.eq.s32.totalorder %s23, 0
      %p228 = por %p226, %p227
      %s230 = sadd.s32 %s229, 1
      %p233 = scmp.eq.s32.totalorder %s17, 1
      %p234 = scmp.ne.s32.totalorder %s229, %s231
      %p235 = scmp.eq.s32.totalorder %s17, 0
      %p236 = por %p234, %p235
      %p237 = scmp.ne.s32.totalorder %s229, %s231
      %p238 = scmp.eq.s32.totalorder %s22, 1
      %p239 = por %p237, %p238
      %p240 = scmp.ne.s32.totalorder %s231, %s232
      %p241 = scmp.eq.s32.totalorder %s22, 0
      %p242 = por %p240, %p241
      %p243 = scmp.ne.s32.totalorder %s231, %s232
      %p244 = scmp.eq.s32.totalorder %s23, 1
      %p245 = por %p243, %p244
      %p247 = scmp.ne.s32.totalorder %s232, %s246
      %p248 = scmp.eq.s32.totalorder %s23, 0
      %p249 = por %p247, %p248
      %s250 = ssub.s32 %s17, %s24
      %p251 = scmp.eq.s32.totalorder %s250, 0
      %s253 = sadd.s32 %s252, 1
      %s254 = scalar_select %p251, %s252, %s253
      %p257 = pneg %p251
      %p258 = scmp.eq.s32.totalorder %s17, 1
      %p259 = por %p257, %p258
      %p260 = scmp.ne.s32.totalorder %s252, %s255
      %p261 = scmp.eq.s32.totalorder %s17, 0
      %p262 = por %p260, %p261
      %p263 = scmp.ne.s32.totalorder %s252, %s255
      %p264 = scmp.eq.s32.totalorder %s22, 1
      %p265 = por %p263, %p264
      %p266 = scmp.ne.s32.totalorder %s255, %s256
      %p267 = scmp.eq.s32.totalorder %s22, 0
      %p268 = por %p266, %p267
      %p269 = scmp.ne.s32.totalorder %s255, %s256
      %p270 = scmp.eq.s32.totalorder %s23, 1
      %p271 = por %p269, %p270
      %p273 = scmp.ne.s32.totalorder %s256, %s272
      %p274 = scmp.eq.s32.totalorder %s23, 0
      %p275 = por %p273, %p274
      %p276 = scmp.le.s32.totalorder 1, %s17
      %p277 = scmp.lt.s32.totalorder %s17, 3
      %p278 = pnand %p276, %p277
      %p279 = pneg %p278
      // Predicated region
      $region9: #{tpu_custom_call.1} parent=5 // pred_check
        _
      $region10: #{tpu_custom_call.1} parent=5 // pred_check_branch
        %281 = sbr.rel (%p278) target = $region12
      $region11: #{tpu_custom_call.1} parent=5 // pred_region
        %s282 = ssub.s32 %s17, 1
        // Predicated region
        $region13: #{tpu_custom_call.1} parent=11 // pred_check
          %p283 = pneg %p116
        $region14: #{tpu_custom_call.1} parent=11 // pred_check_branch
          %285 = sbr.rel (%p283) target = $region16
        $region15: #{tpu_custom_call.1} parent=11 // pred_region
          _
        $region16: #{tpu_custom_call.1} parent=11 // pred_fallthru
          _
        // Predicated region
        $region17: #{tpu_custom_call.1} parent=11 // pred_check
          %p286 = pneg %p137
        $region18: #{tpu_custom_call.1} parent=11 // pred_check_branch
          %288 = sbr.rel (%p286) target = $region20
        $region19: #{tpu_custom_call.1} parent=11 // pred_region
          _
        $region20: #{tpu_custom_call.1} parent=11 // pred_fallthru
          _
        // Predicated region
        $region21: #{tpu_custom_call.1} parent=11 // pred_check
          %p289 = pneg %p158
        $region22: #{tpu_custom_call.1} parent=11 // pred_check_branch
          %291 = sbr.rel (%p289) target = $region24
        $region23: #{tpu_custom_call.1} parent=11 // pred_region
          _
        $region24: #{tpu_custom_call.1} parent=11 // pred_fallthru
          _
        // Predicated region
        $region25: #{tpu_custom_call.1} parent=11 // pred_check
          %p292 = pneg %p179
        $region26: #{tpu_custom_call.1} parent=11 // pred_check_branch
          %294 = sbr.rel (%p292) target = $region28
        $region27: #{tpu_custom_call.1} parent=11 // pred_region
          _
        $region28: #{tpu_custom_call.1} parent=11 // pred_fallthru
          _
        // Predicated region
        $region29: #{tpu_custom_call.1} parent=11 // pred_check
          %p295 = pneg %p200
        $region30: #{tpu_custom_call.1} parent=11 // pred_check_branch
          %297 = sbr.rel (%p295) target = $region32
        $region31: #{tpu_custom_call.1} parent=11 // pred_region
          _
        $region32: #{tpu_custom_call.1} parent=11 // pred_fallthru
          _
        // Predicated region
        $region33: #{tpu_custom_call.1} parent=11 // pred_check
          %p298 = pneg %p221
        $region34: #{tpu_custom_call.1} parent=11 // pred_check_branch
          %300 = sbr.rel (%p298) target = $region36
        $region35: #{tpu_custom_call.1} parent=11 // pred_region
          _
        $region36: #{tpu_custom_call.1} parent=11 // pred_fallthru
          _
        // Predicated region
        $region37: #{tpu_custom_call.1} parent=11 // pred_check
          %p301 = pneg %p242
        $region38: #{tpu_custom_call.1} parent=11 // pred_check_branch
          %303 = sbr.rel (%p301) target = $region40
        $region39: #{tpu_custom_call.1} parent=11 // pred_region
          %s305 = ssub.s32 16, 16
          %306 = vsyncadd [#allocation3], %s305
          %s308 = sshll.u32 %s9, 4
          %s309 = int_to_ptr.vmem [resolvable:$true] %s308
          %311 = dma.vmem_to_smem %s309, 16, [#allocation2], [#allocation3]
        $region40: #{tpu_custom_call.1} parent=11 // pred_fallthru
          _
      $region12: #{tpu_custom_call.1} parent=5 // pred_fallthru
        _
      %p312 = scmp.lt.s32.totalorder %s17, 2
      // Predicated region
      $region41: #{tpu_custom_call.1} parent=5 // pred_check
        %p313 = pneg %p312
      $region42: #{tpu_custom_call.1} parent=5 // pred_check_branch
        %315 = sbr.rel (%p313) target = $region44
      $region43: #{tpu_custom_call.1} parent=5 // pred_region
        // Predicated region
        $region45: #{tpu_custom_call.1} parent=43 // pred_check
          %p316 = pneg %p37
        $region46: #{tpu_custom_call.1} parent=43 // pred_check_branch
          %318 = sbr.rel (%p316) target = $region48
        $region47: #{tpu_custom_call.1} parent=43 // pred_region
          %s319 = smul.u32 16, %s17
          %p320 = scmp.lt.s32.totalorder %s319, 31
          %s321 = scalar_select %p320, %s319, 31
          %s322 = smul.addr %s321, 4
          %s323 = scalar_lea.vmem %s0, %s322
          %s324 = smul.u32 16, %s17
        $region48: #{tpu_custom_call.1} parent=43 // pred_fallthru
          _
        // Predicated region
        $region49: #{tpu_custom_call.1} parent=43 // pred_check
          %p325 = pneg %p63
        $region50: #{tpu_custom_call.1} parent=43 // pred_check_branch
          %327 = sbr.rel (%p325) target = $region52
        $region51: #{tpu_custom_call.1} parent=43 // pred_region
          %s328 = smul.u32 16, %s17
          %p329 = scmp.lt.s32.totalorder %s328, 31
          %s330 = scalar_select %p329, %s328, 31
          %s331 = smul.addr %s330, 8
          %s332 = scalar_lea.vmem %s1, %s331
          %s333 = smul.u32 16, %s17
        $region52: #{tpu_custom_call.1} parent=43 // pred_fallthru
          _
        // Predicated region
        $region53: #{tpu_custom_call.1} parent=43 // pred_check
          %p334 = pneg %p89
        $region54: #{tpu_custom_call.1} parent=43 // pred_check_branch
          %336 = sbr.rel (%p334) target = $region56
        $region55: #{tpu_custom_call.1} parent=43 // pred_region
          %s337 = smul.u32 16, %s17
          %p338 = scmp.lt.s32.totalorder %s337, 31
          %s339 = scalar_select %p338, %s337, 31
          %s340 = smul.addr %s339, 8
          %s341 = scalar_lea.vmem %s2, %s340
          %s342 = smul.u32 16, %s17
        $region56: #{tpu_custom_call.1} parent=43 // pred_fallthru
          _
      $region44: #{tpu_custom_call.1} parent=5 // pred_fallthru
        _
      %p343 = scmp.le.s32.totalorder 1, %s17
      %p344 = scmp.lt.s32.totalorder %s17, 3
      %p345 = pnand %p343, %p344
      %p346 = pneg %p345
      // Predicated region
      $region57: #{tpu_custom_call.1} parent=5 // pred_check
        _
      $region58: #{tpu_custom_call.1} parent=5 // pred_check_branch
        %348 = sbr.rel (%p345) target = $region60
      $region59: #{tpu_custom_call.1} parent=5 // pred_region
        %s349 = ssub.s32 %s17, 1
        // Predicated region
        $region61: #{tpu_custom_call.1} parent=59 // pred_check
          %p350 = pneg %p242
        $region62: #{tpu_custom_call.1} parent=59 // pred_check_branch
          %352 = sbr.rel (%p350) target = $region64
        $region63: #{tpu_custom_call.1} parent=59 // pred_region
          %353 = dma.done [#allocation3], 16
        $region64: #{tpu_custom_call.1} parent=59 // pred_fallthru
          _
        %354 = sfence
        %s355 = smul.u32 16, %s22
        %p356 = scmp.lt.s32.totalorder %s355, 31
        %s357 = scalar_select %p356, %s355, 31
        %s358 = smul.addr %s357, 4
        %s359 = scalar_lea.vmem %s0, %s358
        %p360 = pneg %p43
        %p361 = pneg %p40
        %s362 = smul.u32 16, %s22
        %p363 = scmp.lt.s32.totalorder %s362, 31
        %s364 = scalar_select %p363, %s362, 31
        %s365 = smul.addr %s364, 8
        %s366 = scalar_lea.vmem %s1, %s365
        %p367 = pneg %p69
        %p368 = pneg %p66
        %s369 = smul.u32 16, %s22
        %p370 = scmp.lt.s32.totalorder %s369, 31
        %s371 = scalar_select %p370, %s369, 31
        %s372 = smul.addr %s371, 8
        %s373 = scalar_lea.vmem %s2, %s372
        %p374 = pneg %p95
        %p375 = pneg %p92
        %p376 = pneg %p116
        %p377 = pneg %p113
        %p378 = pneg %p137
        %p379 = pneg %p134
        %p380 = pneg %p158
        %p381 = pneg %p155
        %p382 = pneg %p179
        %p383 = pneg %p176
        %p384 = pneg %p200
        %p385 = pneg %p197
        %p386 = pneg %p221
        %p387 = pneg %p218
        %p388 = pneg %p242
        %p389 = pneg %p239
        %p390 = pneg %p268
        %p391 = pneg %p265
        %s392 = smul.u32 16, %s22
        %p393 = scmp.lt.s32.totalorder %s392, 31
        %s394 = scalar_select %p393, %s392, 31
        %s395 = smul.addr %s394, 8
        %s396 = scalar_lea.vmem %s10, %s395
        %s397 = smul.u32 16, %s22
        %p398 = scmp.lt.s32.totalorder %s397, 31
        %s399 = scalar_select %p398, %s397, 31
        %s400 = smul.addr %s399, 4
        %s401 = scalar_lea.vmem %s0, %s400
        %s402 = smul.u32 16, %s22
        %s403 = smul.u32 16, %s22
        %p404 = scmp.lt.s32.totalorder %s403, 31
        %s405 = scalar_select %p404, %s403, 31
        %s406 = smul.addr %s405, 8
        %s407 = scalar_lea.vmem %s1, %s406
        %s408 = smul.u32 16, %s22
        %s409 = smul.u32 16, %s22
        %p410 = scmp.lt.s32.totalorder %s409, 31
        %s411 = scalar_select %p410, %s409, 31
        %s412 = smul.addr %s411, 8
        %s413 = scalar_lea.vmem %s2, %s412
        %s414 = smul.u32 16, %s22
        %s415 = smul.u32 16, %s22
        %p416 = scmp.lt.s32.totalorder %s415, 31
        %s417 = scalar_select %p416, %s415, 31
        %s418 = smul.addr %s417, 8
        %s419 = scalar_lea.vmem %s10, %s418
        %s420 = smul.u32 16, %s22
        %s422 = sld [smem:[#allocation2]]
        %s423 = sld [smem:[#allocation2 + $0x1]]
        %s424 = sld [smem:[#allocation2 + $0x2]]
        %s425 = sld [smem:[#allocation2 + $0x3]]
        %v426 = vld [vmem:[%s401] sm:$0xf]
        %v427 = vld [vmem:[%s401 + $0x4] sm:$0xf]
        %v428 = vld [vmem:[%s401 + $0x8] sm:$0xf]
        %v429 = vld [vmem:[%s401 + $0xc] sm:$0xf]
        %v430 = vld [vmem:[%s401 + $0x10] sm:$0xf]
        %v431 = vld [vmem:[%s401 + $0x14] sm:$0xf]
        %v432 = vld [vmem:[%s401 + $0x18] sm:$0xf]
        %v433 = vld [vmem:[%s401 + $0x1c] sm:$0xf]
        %v434 = vld [vmem:[%s401 + $0x20] sm:$0xf]
        %v435 = vld [vmem:[%s401 + $0x24] sm:$0xf]
        %v436 = vld [vmem:[%s401 + $0x28] sm:$0xf]
        %v437 = vld [vmem:[%s401 + $0x2c] sm:$0xf]
        %v438 = vld [vmem:[%s401 + $0x30] sm:$0xf]
        %v439 = vld [vmem:[%s401 + $0x34] sm:$0xf]
        %v440 = vld [vmem:[%s401 + $0x38] sm:$0xf]
        %v441 = vld [vmem:[%s401 + $0x3c] sm:$0xf]
        %v442 = vld [vmem:[%s3] sm:$0xf]
        %v443 = vld [vmem:[%s3 + $0x4] sm:$0xf]
        %v444 = vld [vmem:[%s3 + $0x8] sm:$0xf]
        %v445 = vld [vmem:[%s3 + $0xc] sm:$0xf]
        %v446 = vld [vmem:[%s4] sm:$0x1]
        %v448 = vlaneseq
        %v449 = vshrl.u32 %v448, 7
        %v450 = vsub.s32 0, %v449
        %v451 = vrot.slane %v446, %v450
        %v469 = vunpack.c.l.b16 %v426
        %v470 = vunpack.c.l.b16 %v427
        %v471 = vunpack.c.l.b16 %v428
        %v472 = vunpack.c.l.b16 %v429
        %v473 = vunpack.c.l.b16 %v430
        %v474 = vunpack.c.l.b16 %v431
        %v475 = vunpack.c.l.b16 %v432
        %v476 = vunpack.c.l.b16 %v433
        %v477 = vunpack.c.l.b16 %v434
        %v478 = vunpack.c.l.b16 %v435
        %v479 = vunpack.c.l.b16 %v436
        %v480 = vunpack.c.l.b16 %v437
        %v481 = vunpack.c.l.b16 %v438
        %v482 = vunpack.c.l.b16 %v439
        %v483 = vunpack.c.l.b16 %v440
        %v484 = vunpack.c.l.b16 %v441
        %v485 = vpack.c.b16 %v470, %v469
        %v486 = vpack.c.b16 %v472, %v471
        %v487 = vpack.c.b16 %v474, %v473
        %v488 = vpack.c.b16 %v476, %v475
        %v489 = vpack.c.b16 %v478, %v477
        %v490 = vpack.c.b16 %v480, %v479
        %v491 = vpack.c.b16 %v482, %v481
        %v492 = vpack.c.b16 %v484, %v483
        %v497 = vunpack.c.l.b16 %v442
        %v498 = vunpack.c.l.b16 %v443
        %v499 = vunpack.c.l.b16 %v444
        %v500 = vunpack.c.l.b16 %v445
        %v501 = vpack.c.b16 %v498, %v497
        %v502 = vpack.c.b16 %v500, %v499
        %vm505 = vcmask 261120
        %v507 = vsel %vm505, %v485, 0
        %v510 = vsel %vm505, %v486, 0
        %v513 = vsel %vm505, %v487, 0
        %v516 = vsel %vm505, %v488, 0
        %v519 = vsel %vm505, %v489, 0
        %v522 = vsel %vm505, %v490, 0
        %v525 = vsel %vm505, %v491, 0
        %v528 = vsel %vm505, %v492, 0
        %530 = vmatprep.subr.bf16.mxu0 0
        %531 = vmatpush1.bf16.msra.mxu0 0
        %532 = vmatprep.subr.bf16.mxu0 0
        %533 = vmatpush1.bf16.msra.mxu0 0
        %534 = vmatprep.subr.bf16.mxu0 0
        %535 = vmatpush1.bf16.msra.mxu0 0
        %536 = vmatprep.subr.bf16.mxu0 0
        %537 = vmatpush1.bf16.msra.mxu0 0
        %538 = vmatprep.subr.bf16.mxu0 0
        %539 = vmatpush1.bf16.msra.mxu0 0
        %540 = vmatprep.subr.bf16.mxu0 0
        %541 = vmatpush1.bf16.msra.mxu0 0
        %542 = vmatprep.subr.bf16.mxu0 0
        %543 = vmatpush1.bf16.msra.mxu0 %v502
        %544 = vmatprep.subr.bf16.mxu0 0
        %545 = vmatpush1.bf16.msra.mxu0 %v501
        %546 = vmatprep.subr.bf16.mxu0 0
        %547 = vmatpush2.bf16.msra.mxu0 0
        %548 = vmatprep.subr.bf16.mxu0 0
        %549 = vmatpush2.bf16.msra.mxu0 0
        %550 = vmatprep.subr.bf16.mxu0 0
        %551 = vmatpush2.bf16.msra.mxu0 0
        %552 = vmatprep.subr.bf16.mxu0 0
        %553 = vmatpush2.bf16.msra.mxu0 0
        %554 = vmatprep.subr.bf16.mxu0 0
        %555 = vmatpush2.bf16.msra.mxu0 0
        %556 = vmatprep.subr.bf16.mxu0 0
        %557 = vmatpush2.bf16.msra.mxu0 0
        %558 = vmatprep.subr.bf16.mxu0 0
        %559 = vmatpush2.bf16.msra.mxu0 0
        %560 = vmatprep.subr.bf16.mxu0 0
        %561 = vmatpush2.bf16.msra.mxu0 0
        %562 = vmatprep.mubr.bf16.mxu0 0
        %563 = vmatmul.mubr.bf16.gmra.mxu0 %v507
        %v564 = vpop.f32.mrf.mxu0
        %v565 = vadd.f32 %v451, %v564
        %v566 = vpop.f32.mrf.mxu0
        %v567 = vpop.f32.mrf.mxu0
        %v568 = vadd.f32 %v451, %v567
        %v569 = vpop.f32.mrf.mxu0
        %570 = vmatprep.mubr.bf16.mxu0 0
        %571 = vmatmul.mubr.bf16.gmra.mxu0 %v510
        %v572 = vpop.f32.mrf.mxu0
        %v573 = vadd.f32 %v451, %v572
        %v574 = vpop.f32.mrf.mxu0
        %v575 = vpop.f32.mrf.mxu0
        %v576 = vadd.f32 %v451, %v575
        %v577 = vpop.f32.mrf.mxu0
        %578 = vmatprep.mubr.bf16.mxu0 0
        %579 = vmatmul.mubr.bf16.gmra.mxu0 %v513
        %v580 = vpop.f32.mrf.mxu0
        %v581 = vadd.f32 %v451, %v580
        %v582 = vpop.f32.mrf.mxu0
        %v583 = vpop.f32.mrf.mxu0
        %v584 = vadd.f32 %v451, %v583
        %v585 = vpop.f32.mrf.mxu0
        %586 = vmatprep.mubr.bf16.mxu0 0
        %587 = vmatmul.mubr.bf16.gmra.mxu0 %v516
        %v588 = vpop.f32.mrf.mxu0
        %v589 = vadd.f32 %v451, %v588
        %v590 = vpop.f32.mrf.mxu0
        %v591 = vpop.f32.mrf.mxu0
        %v592 = vadd.f32 %v451, %v591
        %v593 = vpop.f32.mrf.mxu0
        %594 = vmatprep.mubr.bf16.mxu0 0
        %595 = vmatmul.mubr.bf16.gmra.mxu0 %v519
        %v596 = vpop.f32.mrf.mxu0
        %v597 = vadd.f32 %v451, %v596
        %v598 = vpop.f32.mrf.mxu0
        %v599 = vpop.f32.mrf.mxu0
        %v600 = vadd.f32 %v451, %v599
        %v601 = vpop.f32.mrf.mxu0
        %602 = vmatprep.mubr.bf16.mxu0 0
        %603 = vmatmul.mubr.bf16.gmra.mxu0 %v522
        %v604 = vpop.f32.mrf.mxu0
        %v605 = vadd.f32 %v451, %v604
        %v606 = vpop.f32.mrf.mxu0
        %v607 = vpop.f32.mrf.mxu0
        %v608 = vadd.f32 %v451, %v607
        %v609 = vpop.f32.mrf.mxu0
        %610 = vmatprep.mubr.bf16.mxu0 0
        %611 = vmatmul.mubr.bf16.gmra.mxu0 %v525
        %v612 = vpop.f32.mrf.mxu0
        %v613 = vadd.f32 %v451, %v612
        %v614 = vpop.f32.mrf.mxu0
        %v615 = vpop.f32.mrf.mxu0
        %v616 = vadd.f32 %v451, %v615
        %v617 = vpop.f32.mrf.mxu0
        %618 = vmatprep.mubr.bf16.mxu0 0
        %619 = vmatmul.mubr.bf16.gmra.mxu0 %v528
        %v620 = vpop.f32.mrf.mxu0
        %v621 = vadd.f32 %v451, %v620
        %v622 = vpop.f32.mrf.mxu0
        %v623 = vpop.f32.mrf.mxu0
        %v624 = vadd.f32 %v451, %v623
        %v625 = vpop.f32.mrf.mxu0
        %626 = vdwg.mxu0
        %vm627 = vcmp.ge.f32.partialorder %v565, 0.0
        %vm628 = vcmp.ge.f32.partialorder %v568, 0.0
        %vm629 = vcmp.ge.f32.partialorder %v573, 0.0
        %vm630 = vcmp.ge.f32.partialorder %v576, 0.0
        %vm631 = vcmp.ge.f32.partialorder %v581, 0.0
        %vm632 = vcmp.ge.f32.partialorder %v584, 0.0
        %vm633 = vcmp.ge.f32.partialorder %v589, 0.0
        %vm634 = vcmp.ge.f32.partialorder %v592, 0.0
        %vm635 = vcmp.ge.f32.partialorder %v597, 0.0
        %vm636 = vcmp.ge.f32.partialorder %v600, 0.0
        %vm637 = vcmp.ge.f32.partialorder %v605, 0.0
        %vm638 = vcmp.ge.f32.partialorder %v608, 0.0
        %vm639 = vcmp.ge.f32.partialorder %v613, 0.0
        %vm640 = vcmp.ge.f32.partialorder %v616, 0.0
        %vm641 = vcmp.ge.f32.partialorder %v621, 0.0
        %vm642 = vcmp.ge.f32.partialorder %v624, 0.0
        %v643 = vstv %s422
        %v644 = vmul.f32 %v643, %v565
        %v645 = vmul.f32 %v643, %v568
        %v646 = vmul.f32 %v643, %v573
        %v647 = vmul.f32 %v643, %v576
        %v648 = vmul.f32 %v643, %v581
        %v649 = vmul.f32 %v643, %v584
        %v650 = vmul.f32 %v643, %v589
        %v651 = vmul.f32 %v643, %v592
        %v652 = vmul.f32 %v643, %v597
        %v653 = vmul.f32 %v643, %v600
        %v654 = vmul.f32 %v643, %v605
        %v655 = vmul.f32 %v643, %v608
        %v656 = vmul.f32 %v643, %v613
        %v657 = vmul.f32 %v643, %v616
        %v658 = vmul.f32 %v643, %v621
        %v659 = vmul.f32 %v643, %v624
        %v660 = vsel %vm627, %v565, %v644
        %v661 = vsel %vm628, %v568, %v645
        %v662 = vsel %vm629, %v573, %v646
        %v663 = vsel %vm630, %v576, %v647
        %v664 = vsel %vm631, %v581, %v648
        %v665 = vsel %vm632, %v584, %v649
        %v666 = vsel %vm633, %v589, %v650
        %v667 = vsel %vm634, %v592, %v651
        %v668 = vsel %vm635, %v597, %v652
        %v669 = vsel %vm636, %v600, %v653
        %v670 = vsel %vm637, %v605, %v654
        %v671 = vsel %vm638, %v608, %v655
        %v672 = vsel %vm639, %v613, %v656
        %v673 = vsel %vm640, %v616, %v657
        %v674 = vsel %vm641, %v621, %v658
        %v675 = vsel %vm642, %v624, %v659
        %v676 = vpack.c.bf16 %v661, %v660
        %v677 = vpack.c.bf16 %v663, %v662
        %v678 = vpack.c.bf16 %v665, %v664
        %v679 = vpack.c.bf16 %v667, %v666
        %v680 = vpack.c.bf16 %v669, %v668
        %v681 = vpack.c.bf16 %v671, %v670
        %v682 = vpack.c.bf16 %v673, %v672
        %v683 = vpack.c.bf16 %v675, %v674
        %v684 = vld [vmem:[%s5] sm:$0xf]
        %v685 = vld [vmem:[%s5 + $0x4] sm:$0xf]
        %v686 = vld [vmem:[%s5 + $0x8] sm:$0xf]
        %v687 = vld [vmem:[%s5 + $0xc] sm:$0xf]
        %v688 = vld [vmem:[%s6] sm:$0x1]
        %v690 = vlaneseq
        %v691 = vshrl.u32 %v690, 7
        %v692 = vsub.s32 0, %v691
        %v693 = vrot.slane %v688, %v692
        %v699 = vunpack.c.l.b16 %v684
        %v700 = vunpack.c.l.b16 %v685
        %v701 = vunpack.c.l.b16 %v686
        %v702 = vunpack.c.l.b16 %v687
        %v703 = vpack.c.b16 %v700, %v699
        %v704 = vpack.c.b16 %v702, %v701
        %v708 = vsel %vm505, %v676, 0
        %v711 = vsel %vm505, %v677, 0
        %v714 = vsel %vm505, %v678, 0
        %v717 = vsel %vm505, %v679, 0
        %v720 = vsel %vm505, %v680, 0
        %v723 = vsel %vm505, %v681, 0
        %v726 = vsel %vm505, %v682, 0
        %v729 = vsel %vm505, %v683, 0
        %731 = vmatprep.subr.bf16.mxu0 0
        %732 = vmatpush1.bf16.msra.mxu0 0
        %733 = vmatprep.subr.bf16.mxu0 0
        %734 = vmatpush1.bf16.msra.mxu0 0
        %735 = vmatprep.subr.bf16.mxu0 0
        %736 = vmatpush1.bf16.msra.mxu0 0
        %737 = vmatprep.subr.bf16.mxu0 0
        %738 = vmatpush1.bf16.msra.mxu0 0
        %739 = vmatprep.subr.bf16.mxu0 0
        %740 = vmatpush1.bf16.msra.mxu0 0
        %741 = vmatprep.subr.bf16.mxu0 0
        %742 = vmatpush1.bf16.msra.mxu0 0
        %743 = vmatprep.subr.bf16.mxu0 0
        %744 = vmatpush1.bf16.msra.mxu0 %v704
        %745 = vmatprep.subr.bf16.mxu0 0
        %746 = vmatpush1.bf16.msra.mxu0 %v703
        %747 = vmatprep.subr.bf16.mxu0 0
        %748 = vmatpush2.bf16.msra.mxu0 0
        %749 = vmatprep.subr.bf16.mxu0 0
        %750 = vmatpush2.bf16.msra.mxu0 0
        %751 = vmatprep.subr.bf16.mxu0 0
        %752 = vmatpush2.bf16.msra.mxu0 0
        %753 = vmatprep.subr.bf16.mxu0 0
        %754 = vmatpush2.bf16.msra.mxu0 0
        %755 = vmatprep.subr.bf16.mxu0 0
        %756 = vmatpush2.bf16.msra.mxu0 0
        %757 = vmatprep.subr.bf16.mxu0 0
        %758 = vmatpush2.bf16.msra.mxu0 0
        %759 = vmatprep.subr.bf16.mxu0 0
        %760 = vmatpush2.bf16.msra.mxu0 0
        %761 = vmatprep.subr.bf16.mxu0 0
        %762 = vmatpush2.bf16.msra.mxu0 0
        %763 = vmatprep.mubr.bf16.mxu0 0
        %764 = vmatmul.mubr.bf16.gmra.mxu0 %v708
        %v765 = vpop.f32.mrf.mxu0
        %v766 = vadd.f32 %v693, %v765
        %v767 = vpop.f32.mrf.mxu0
        %v768 = vpop.f32.mrf.mxu0
        %v769 = vadd.f32 %v693, %v768
        %v770 = vpop.f32.mrf.mxu0
        %771 = vmatprep.mubr.bf16.mxu0 0
        %772 = vmatmul.mubr.bf16.gmra.mxu0 %v711
        %v773 = vpop.f32.mrf.mxu0
        %v774 = vadd.f32 %v693, %v773
        %v775 = vpop.f32.mrf.mxu0
        %v776 = vpop.f32.mrf.mxu0
        %v777 = vadd.f32 %v693, %v776
        %v778 = vpop.f32.mrf.mxu0
        %779 = vmatprep.mubr.bf16.mxu0 0
        %780 = vmatmul.mubr.bf16.gmra.mxu0 %v714
        %v781 = vpop.f32.mrf.mxu0
        %v782 = vadd.f32 %v693, %v781
        %v783 = vpop.f32.mrf.mxu0
        %v784 = vpop.f32.mrf.mxu0
        %v785 = vadd.f32 %v693, %v784
        %v786 = vpop.f32.mrf.mxu0
        %787 = vmatprep.mubr.bf16.mxu0 0
        %788 = vmatmul.mubr.bf16.gmra.mxu0 %v717
        %v789 = vpop.f32.mrf.mxu0
        %v790 = vadd.f32 %v693, %v789
        %v791 = vpop.f32.mrf.mxu0
        %v792 = vpop.f32.mrf.mxu0
        %v793 = vadd.f32 %v693, %v792
        %v794 = vpop.f32.mrf.mxu0
        %795 = vmatprep.mubr.bf16.mxu0 0
        %796 = vmatmul.mubr.bf16.gmra.mxu0 %v720
        %v797 = vpop.f32.mrf.mxu0
        %v798 = vadd.f32 %v693, %v797
        %v799 = vpop.f32.mrf.mxu0
        %v800 = vpop.f32.mrf.mxu0
        %v801 = vadd.f32 %v693, %v800
        %v802 = vpop.f32.mrf.mxu0
        %803 = vmatprep.mubr.bf16.mxu0 0
        %804 = vmatmul.mubr.bf16.gmra.mxu0 %v723
        %v805 = vpop.f32.mrf.mxu0
        %v806 = vadd.f32 %v693, %v805
        %v807 = vpop.f32.mrf.mxu0
        %v808 = vpop.f32.mrf.mxu0
        %v809 = vadd.f32 %v693, %v808
        %v810 = vpop.f32.mrf.mxu0
        %811 = vmatprep.mubr.bf16.mxu0 0
        %812 = vmatmul.mubr.bf16.gmra.mxu0 %v726
        %v813 = vpop.f32.mrf.mxu0
        %v814 = vadd.f32 %v693, %v813
        %v815 = vpop.f32.mrf.mxu0
        %v816 = vpop.f32.mrf.mxu0
        %v817 = vadd.f32 %v693, %v816
        %v818 = vpop.f32.mrf.mxu0
        %819 = vmatprep.mubr.bf16.mxu0 0
        %820 = vmatmul.mubr.bf16.gmra.mxu0 %v729
        %v821 = vpop.f32.mrf.mxu0
        %v822 = vadd.f32 %v693, %v821
        %v823 = vpop.f32.mrf.mxu0
        %v824 = vpop.f32.mrf.mxu0
        %v825 = vadd.f32 %v693, %v824
        %v826 = vpop.f32.mrf.mxu0
        %827 = vdwg.mxu0
        %vm828 = vcmp.ge.f32.partialorder %v766, 0.0
        %vm829 = vcmp.ge.f32.partialorder %v769, 0.0
        %vm830 = vcmp.ge.f32.partialorder %v774, 0.0
        %vm831 = vcmp.ge.f32.partialorder %v777, 0.0
        %vm832 = vcmp.ge.f32.partialorder %v782, 0.0
        %vm833 = vcmp.ge.f32.partialorder %v785, 0.0
        %vm834 = vcmp.ge.f32.partialorder %v790, 0.0
        %vm835 = vcmp.ge.f32.partialorder %v793, 0.0
        %vm836 = vcmp.ge.f32.partialorder %v798, 0.0
        %vm837 = vcmp.ge.f32.partialorder %v801, 0.0
        %vm838 = vcmp.ge.f32.partialorder %v806, 0.0
        %vm839 = vcmp.ge.f32.partialorder %v809, 0.0
        %vm840 = vcmp.ge.f32.partialorder %v814, 0.0
        %vm841 = vcmp.ge.f32.partialorder %v817, 0.0
        %vm842 = vcmp.ge.f32.partialorder %v822, 0.0
        %vm843 = vcmp.ge.f32.partialorder %v825, 0.0
        %v844 = vstv %s423
        %v845 = vmul.f32 %v844, %v766
        %v846 = vmul.f32 %v844, %v769
        %v847 = vmul.f32 %v844, %v774
        %v848 = vmul.f32 %v844, %v777
        %v849 = vmul.f32 %v844, %v782
        %v850 = vmul.f32 %v844, %v785
        %v851 = vmul.f32 %v844, %v790
        %v852 = vmul.f32 %v844, %v793
        %v853 = vmul.f32 %v844, %v798
        %v854 = vmul.f32 %v844, %v801
        %v855 = vmul.f32 %v844, %v806
        %v856 = vmul.f32 %v844, %v809
        %v857 = vmul.f32 %v844, %v814
        %v858 = vmul.f32 %v844, %v817
        %v859 = vmul.f32 %v844, %v822
        %v860 = vmul.f32 %v844, %v825
        %v861 = vsel %vm828, %v766, %v845
        %v862 = vsel %vm829, %v769, %v846
        %v863 = vsel %vm830, %v774, %v847
        %v864 = vsel %vm831, %v777, %v848
        %v865 = vsel %vm832, %v782, %v849
        %v866 = vsel %vm833, %v785, %v850
        %v867 = vsel %vm834, %v790, %v851
        %v868 = vsel %vm835, %v793, %v852
        %v869 = vsel %vm836, %v798, %v853
        %v870 = vsel %vm837, %v801, %v854
        %v871 = vsel %vm838, %v806, %v855
        %v872 = vsel %vm839, %v809, %v856
        %v873 = vsel %vm840, %v814, %v857
        %v874 = vsel %vm841, %v817, %v858
        %v875 = vsel %vm842, %v822, %v859
        %v876 = vsel %vm843, %v825, %v860
        %v877 = vpack.c.bf16 %v862, %v861
        %v878 = vpack.c.bf16 %v864, %v863
        %v879 = vpack.c.bf16 %v866, %v865
        %v880 = vpack.c.bf16 %v868, %v867
        %v881 = vpack.c.bf16 %v870, %v869
        %v882 = vpack.c.bf16 %v872, %v871
        %v883 = vpack.c.bf16 %v874, %v873
        %v884 = vpack.c.bf16 %v876, %v875
        %v885 = vld [vmem:[%s7] sm:$0xf]
        %v886 = vld [vmem:[%s7 + $0x4] sm:$0xf]
        %v887 = vld [vmem:[%s7 + $0x8] sm:$0xf]
        %v888 = vld [vmem:[%s7 + $0xc] sm:$0xf]
        %v889 = vstv %s424
        %v894 = vunpack.c.l.b16 %v885
        %v895 = vunpack.c.l.b16 %v886
        %v896 = vunpack.c.l.b16 %v887
        %v897 = vunpack.c.l.b16 %v888
        %v898 = vpack.c.b16 %v895, %v894
        %v899 = vpack.c.b16 %v897, %v896
        %v903 = vsel %vm505, %v877, 0
        %v906 = vsel %vm505, %v878, 0
        %v909 = vsel %vm505, %v879, 0
        %v912 = vsel %vm505, %v880, 0
        %v915 = vsel %vm505, %v881, 0
        %v918 = vsel %vm505, %v882, 0
        %v921 = vsel %vm505, %v883, 0
        %v924 = vsel %vm505, %v884, 0
        %926 = vmatprep.subr.bf16.mxu0 0
        %927 = vmatpush1.bf16.msra.mxu0 0
        %928 = vmatprep.subr.bf16.mxu0 0
        %929 = vmatpush1.bf16.msra.mxu0 0
        %930 = vmatprep.subr.bf16.mxu0 0
        %931 = vmatpush1.bf16.msra.mxu0 0
        %932 = vmatprep.subr.bf16.mxu0 0
        %933 = vmatpush1.bf16.msra.mxu0 0
        %934 = vmatprep.subr.bf16.mxu0 0
        %935 = vmatpush1.bf16.msra.mxu0 0
        %936 = vmatprep.subr.bf16.mxu0 0
        %937 = vmatpush1.bf16.msra.mxu0 0
        %938 = vmatprep.subr.bf16.mxu0 0
        %939 = vmatpush1.bf16.msra.mxu0 %v899
        %940 = vmatprep.subr.bf16.mxu0 0
        %941 = vmatpush1.bf16.msra.mxu0 %v898
        %942 = vmatprep.subr.bf16.mxu0 0
        %943 = vmatpush2.bf16.msra.mxu0 0
        %944 = vmatprep.subr.bf16.mxu0 0
        %945 = vmatpush2.bf16.msra.mxu0 0
        %946 = vmatprep.subr.bf16.mxu0 0
        %947 = vmatpush2.bf16.msra.mxu0 0
        %948 = vmatprep.subr.bf16.mxu0 0
        %949 = vmatpush2.bf16.msra.mxu0 0
        %950 = vmatprep.subr.bf16.mxu0 0
        %951 = vmatpush2.bf16.msra.mxu0 0
        %952 = vmatprep.subr.bf16.mxu0 0
        %953 = vmatpush2.bf16.msra.mxu0 0
        %954 = vmatprep.subr.bf16.mxu0 0
        %955 = vmatpush2.bf16.msra.mxu0 0
        %956 = vmatprep.subr.bf16.mxu0 0
        %957 = vmatpush2.bf16.msra.mxu0 0
        %958 = vmatprep.mubr.bf16.mxu0 0
        %959 = vmatmul.mubr.bf16.gmra.mxu0 %v903
        %v960 = vpop.f32.mrf.mxu0
        %v961 = vadd.f32 %v889, %v960
        %v962 = vpop.f32.mrf.mxu0
        %v963 = vpop.f32.mrf.mxu0
        %v964 = vadd.f32 %v889, %v963
        %v965 = vpop.f32.mrf.mxu0
        %966 = vmatprep.mubr.bf16.mxu0 0
        %967 = vmatmul.mubr.bf16.gmra.mxu0 %v906
        %v968 = vpop.f32.mrf.mxu0
        %v969 = vadd.f32 %v889, %v968
        %v970 = vpop.f32.mrf.mxu0
        %v971 = vpop.f32.mrf.mxu0
        %v972 = vadd.f32 %v889, %v971
        %v973 = vpop.f32.mrf.mxu0
        %974 = vmatprep.mubr.bf16.mxu0 0
        %975 = vmatmul.mubr.bf16.gmra.mxu0 %v909
        %v976 = vpop.f32.mrf.mxu0
        %v977 = vadd.f32 %v889, %v976
        %v978 = vpop.f32.mrf.mxu0
        %v979 = vpop.f32.mrf.mxu0
        %v980 = vadd.f32 %v889, %v979
        %v981 = vpop.f32.mrf.mxu0
        %982 = vmatprep.mubr.bf16.mxu0 0
        %983 = vmatmul.mubr.bf16.gmra.mxu0 %v912
        %v984 = vpop.f32.mrf.mxu0
        %v985 = vadd.f32 %v889, %v984
        %v986 = vpop.f32.mrf.mxu0
        %v987 = vpop.f32.mrf.mxu0
        %v988 = vadd.f32 %v889, %v987
        %v989 = vpop.f32.mrf.mxu0
        %990 = vmatprep.mubr.bf16.mxu0 0
        %991 = vmatmul.mubr.bf16.gmra.mxu0 %v915
        %v992 = vpop.f32.mrf.mxu0
        %v993 = vadd.f32 %v889, %v992
        %v994 = vpop.f32.mrf.mxu0
        %v995 = vpop.f32.mrf.mxu0
        %v996 = vadd.f32 %v889, %v995
        %v997 = vpop.f32.mrf.mxu0
        %998 = vmatprep.mubr.bf16.mxu0 0
        %999 = vmatmul.mubr.bf16.gmra.mxu0 %v918
        %v1000 = vpop.f32.mrf.mxu0
        %v1001 = vadd.f32 %v889, %v1000
        %v1002 = vpop.f32.mrf.mxu0
        %v1003 = vpop.f32.mrf.mxu0
        %v1004 = vadd.f32 %v889, %v1003
        %v1005 = vpop.f32.mrf.mxu0
        %1006 = vmatprep.mubr.bf16.mxu0 0
        %1007 = vmatmul.mubr.bf16.gmra.mxu0 %v921
        %v1008 = vpop.f32.mrf.mxu0
        %v1009 = vadd.f32 %v889, %v1008
        %v1010 = vpop.f32.mrf.mxu0
        %v1011 = vpop.f32.mrf.mxu0
        %v1012 = vadd.f32 %v889, %v1011
        %v1013 = vpop.f32.mrf.mxu0
        %1014 = vmatprep.mubr.bf16.mxu0 0
        %1015 = vmatmul.mubr.bf16.gmra.mxu0 %v924
        %v1016 = vpop.f32.mrf.mxu0
        %v1017 = vadd.f32 %v889, %v1016
        %v1018 = vpop.f32.mrf.mxu0
        %v1019 = vpop.f32.mrf.mxu0
        %v1020 = vadd.f32 %v889, %v1019
        %v1021 = vpop.f32.mrf.mxu0
        %1022 = vdwg.mxu0
        %v1023 = vld [vmem:[%s407] sm:$0xff]
        %v1024 = vld [vmem:[%s407 + $0x8] sm:$0xff]
        %v1025 = vld [vmem:[%s407 + $0x10] sm:$0xff]
        %v1026 = vld [vmem:[%s407 + $0x18] sm:$0xff]
        %v1027 = vld [vmem:[%s407 + $0x20] sm:$0xff]
        %v1028 = vld [vmem:[%s407 + $0x28] sm:$0xff]
        %v1029 = vld [vmem:[%s407 + $0x30] sm:$0xff]
        %v1030 = vld [vmem:[%s407 + $0x38] sm:$0xff]
        %v1031 = vld [vmem:[%s407 + $0x40] sm:$0xff]
        %v1032 = vld [vmem:[%s407 + $0x48] sm:$0xff]
        %v1033 = vld [vmem:[%s407 + $0x50] sm:$0xff]
        %v1034 = vld [vmem:[%s407 + $0x58] sm:$0xff]
        %v1035 = vld [vmem:[%s407 + $0x60] sm:$0xff]
        %v1036 = vld [vmem:[%s407 + $0x68] sm:$0xff]
        %v1037 = vld [vmem:[%s407 + $0x70] sm:$0xff]
        %v1038 = vld [vmem:[%s407 + $0x78] sm:$0xff]
        %v1039 = vadd.f32 %v961, %v1023
        %v1040 = vadd.f32 %v964, %v1024
        %v1041 = vadd.f32 %v969, %v1025
        %v1042 = vadd.f32 %v972, %v1026
        %v1043 = vadd.f32 %v977, %v1027
        %v1044 = vadd.f32 %v980, %v1028
        %v1045 = vadd.f32 %v985, %v1029
        %v1046 = vadd.f32 %v988, %v1030
        %v1047 = vadd.f32 %v993, %v1031
        %v1048 = vadd.f32 %v996, %v1032
        %v1049 = vadd.f32 %v1001, %v1033
        %v1050 = vadd.f32 %v1004, %v1034
        %v1051 = vadd.f32 %v1009, %v1035
        %v1052 = vadd.f32 %v1012, %v1036
        %v1053 = vadd.f32 %v1017, %v1037
        %v1054 = vadd.f32 %v1020, %v1038
        %v1055 = vld [vmem:[%s8] sm:$0xf]
        %v1056 = vld [vmem:[%s8 + $0x4] sm:$0xf]
        %v1057 = vld [vmem:[%s8 + $0x8] sm:$0xf]
        %v1058 = vld [vmem:[%s8 + $0xc] sm:$0xf]
        %v1059 = vstv %s425
        %v1064 = vunpack.c.l.b16 %v1055
        %v1065 = vunpack.c.l.b16 %v1056
        %v1066 = vunpack.c.l.b16 %v1057
        %v1067 = vunpack.c.l.b16 %v1058
        %v1068 = vpack.c.b16 %v1065, %v1064
        %v1069 = vpack.c.b16 %v1067, %v1066
        %1072 = vmatprep.subr.bf16.mxu0 0
        %1073 = vmatpush1.bf16.msra.mxu0 0
        %1074 = vmatprep.subr.bf16.mxu0 0
        %1075 = vmatpush1.bf16.msra.mxu0 0
        %1076 = vmatprep.subr.bf16.mxu0 0
        %1077 = vmatpush1.bf16.msra.mxu0 0
        %1078 = vmatprep.subr.bf16.mxu0 0
        %1079 = vmatpush1.bf16.msra.mxu0 0
        %1080 = vmatprep.subr.bf16.mxu0 0
        %1081 = vmatpush1.bf16.msra.mxu0 0
        %1082 = vmatprep.subr.bf16.mxu0 0
        %1083 = vmatpush1.bf16.msra.mxu0 0
        %1084 = vmatprep.subr.bf16.mxu0 0
        %1085 = vmatpush1.bf16.msra.mxu0 %v1069
        %1086 = vmatprep.subr.bf16.mxu0 0
        %1087 = vmatpush1.bf16.msra.mxu0 %v1068
        %1088 = vmatprep.subr.bf16.mxu0 0
        %1089 = vmatpush2.bf16.msra.mxu0 0
        %1090 = vmatprep.subr.bf16.mxu0 0
        %1091 = vmatpush2.bf16.msra.mxu0 0
        %1092 = vmatprep.subr.bf16.mxu0 0
        %1093 = vmatpush2.bf16.msra.mxu0 0
        %1094 = vmatprep.subr.bf16.mxu0 0
        %1095 = vmatpush2.bf16.msra.mxu0 0
        %1096 = vmatprep.subr.bf16.mxu0 0
        %1097 = vmatpush2.bf16.msra.mxu0 0
        %1098 = vmatprep.subr.bf16.mxu0 0
        %1099 = vmatpush2.bf16.msra.mxu0 0
        %1100 = vmatprep.subr.bf16.mxu0 0
        %1101 = vmatpush2.bf16.msra.mxu0 0
        %1102 = vmatprep.subr.bf16.mxu0 0
        %1103 = vmatpush2.bf16.msra.mxu0 0
        %1104 = vmatprep.mubr.bf16.mxu0 0
        %1105 = vmatmul.mubr.bf16.gmra.mxu0 %v903
        %v1106 = vpop.f32.mrf.mxu0
        %v1107 = vadd.f32 %v1059, %v1106
        %v1108 = vpop.f32.mrf.mxu0
        %v1109 = vpop.f32.mrf.mxu0
        %v1110 = vadd.f32 %v1059, %v1109
        %v1111 = vpop.f32.mrf.mxu0
        %1112 = vmatprep.mubr.bf16.mxu0 0
        %1113 = vmatmul.mubr.bf16.gmra.mxu0 %v906
        %v1114 = vpop.f32.mrf.mxu0
        %v1115 = vadd.f32 %v1059, %v1114
        %v1116 = vpop.f32.mrf.mxu0
        %v1117 = vpop.f32.mrf.mxu0
        %v1118 = vadd.f32 %v1059, %v1117
        %v1119 = vpop.f32.mrf.mxu0
        %1120 = vmatprep.mubr.bf16.mxu0 0
        %1121 = vmatmul.mubr.bf16.gmra.mxu0 %v909
        %v1122 = vpop.f32.mrf.mxu0
        %v1123 = vadd.f32 %v1059, %v1122
        %v1124 = vpop.f32.mrf.mxu0
        %v1125 = vpop.f32.mrf.mxu0
        %v1126 = vadd.f32 %v1059, %v1125
        %v1127 = vpop.f32.mrf.mxu0
        %1128 = vmatprep.mubr.bf16.mxu0 0
        %1129 = vmatmul.mubr.bf16.gmra.mxu0 %v912
        %v1130 = vpop.f32.mrf.mxu0
        %v1131 = vadd.f32 %v1059, %v1130
        %v1132 = vpop.f32.mrf.mxu0
        %v1133 = vpop.f32.mrf.mxu0
        %v1134 = vadd.f32 %v1059, %v1133
        %v1135 = vpop.f32.mrf.mxu0
        %1136 = vmatprep.mubr.bf16.mxu0 0
        %1137 = vmatmul.mubr.bf16.gmra.mxu0 %v915
        %v1138 = vpop.f32.mrf.mxu0
        %v1139 = vadd.f32 %v1059, %v1138
        %v1140 = vpop.f32.mrf.mxu0
        %v1141 = vpop.f32.mrf.mxu0
        %v1142 = vadd.f32 %v1059, %v1141
        %v1143 = vpop.f32.mrf.mxu0
        %1144 = vmatprep.mubr.bf16.mxu0 0
        %1145 = vmatmul.mubr.bf16.gmra.mxu0 %v918
        %v1146 = vpop.f32.mrf.mxu0
        %v1147 = vadd.f32 %v1059, %v1146
        %v1148 = vpop.f32.mrf.mxu0
        %v1149 = vpop.f32.mrf.mxu0
        %v1150 = vadd.f32 %v1059, %v1149
        %v1151 = vpop.f32.mrf.mxu0
        %1152 = vmatprep.mubr.bf16.mxu0 0
        %1153 = vmatmul.mubr.bf16.gmra.mxu0 %v921
        %v1154 = vpop.f32.mrf.mxu0
        %v1155 = vadd.f32 %v1059, %v1154
        %v1156 = vpop.f32.mrf.mxu0
        %v1157 = vpop.f32.mrf.mxu0
        %v1158 = vadd.f32 %v1059, %v1157
        %v1159 = vpop.f32.mrf.mxu0
        %1160 = vmatprep.mubr.bf16.mxu0 0
        %1161 = vmatmul.mubr.bf16.gmra.mxu0 %v924
        %v1162 = vpop.f32.mrf.mxu0
        %v1163 = vadd.f32 %v1059, %v1162
        %v1164 = vpop.f32.mrf.mxu0
        %v1165 = vpop.f32.mrf.mxu0
        %v1166 = vadd.f32 %v1059, %v1165
        %v1167 = vpop.f32.mrf.mxu0
        %1168 = vdwg.mxu0
        %v1169 = vld [vmem:[%s413] sm:$0xff]
        %v1170 = vld [vmem:[%s413 + $0x8] sm:$0xff]
        %v1171 = vld [vmem:[%s413 + $0x10] sm:$0xff]
        %v1172 = vld [vmem:[%s413 + $0x18] sm:$0xff]
        %v1173 = vld [vmem:[%s413 + $0x20] sm:$0xff]
        %v1174 = vld [vmem:[%s413 + $0x28] sm:$0xff]
        %v1175 = vld [vmem:[%s413 + $0x30] sm:$0xff]
        %v1176 = vld [vmem:[%s413 + $0x38] sm:$0xff]
        %v1177 = vld [vmem:[%s413 + $0x40] sm:$0xff]
        %v1178 = vld [vmem:[%s413 + $0x48] sm:$0xff]
        %v1179 = vld [vmem:[%s413 + $0x50] sm:$0xff]
        %v1180 = vld [vmem:[%s413 + $0x58] sm:$0xff]
        %v1181 = vld [vmem:[%s413 + $0x60] sm:$0xff]
        %v1182 = vld [vmem:[%s413 + $0x68] sm:$0xff]
        %v1183 = vld [vmem:[%s413 + $0x70] sm:$0xff]
        %v1184 = vld [vmem:[%s413 + $0x78] sm:$0xff]
        %v1185 = vadd.f32 %v1107, %v1169
        %v1186 = vadd.f32 %v1110, %v1170
        %v1187 = vadd.f32 %v1115, %v1171
        %v1188 = vadd.f32 %v1118, %v1172
        %v1189 = vadd.f32 %v1123, %v1173
        %v1190 = vadd.f32 %v1126, %v1174
        %v1191 = vadd.f32 %v1131, %v1175
        %v1192 = vadd.f32 %v1134, %v1176
        %v1193 = vadd.f32 %v1139, %v1177
        %v1194 = vadd.f32 %v1142, %v1178
        %v1195 = vadd.f32 %v1147, %v1179
        %v1196 = vadd.f32 %v1150, %v1180
        %v1197 = vadd.f32 %v1155, %v1181
        %v1198 = vadd.f32 %v1158, %v1182
        %v1199 = vadd.f32 %v1163, %v1183
        %v1200 = vadd.f32 %v1166, %v1184
        %vm1201 = vcmp.gt.f32.partialorder %v1185, %v1039
        %vm1202 = vcmp.gt.f32.partialorder %v1186, %v1040
        %vm1203 = vcmp.gt.f32.partialorder %v1187, %v1041
        %vm1204 = vcmp.gt.f32.partialorder %v1188, %v1042
        %vm1205 = vcmp.gt.f32.partialorder %v1189, %v1043
        %vm1206 = vcmp.gt.f32.partialorder %v1190, %v1044
        %vm1207 = vcmp.gt.f32.partialorder %v1191, %v1045
        %vm1208 = vcmp.gt.f32.partialorder %v1192, %v1046
        %vm1209 = vcmp.gt.f32.partialorder %v1193, %v1047
        %vm1210 = vcmp.gt.f32.partialorder %v1194, %v1048
        %vm1211 = vcmp.gt.f32.partialorder %v1195, %v1049
        %vm1212 = vcmp.gt.f32.partialorder %v1196, %v1050
        %vm1213 = vcmp.gt.f32.partialorder %v1197, %v1051
        %vm1214 = vcmp.gt.f32.partialorder %v1198, %v1052
        %vm1215 = vcmp.gt.f32.partialorder %v1199, %v1053
        %vm1216 = vcmp.gt.f32.partialorder %v1200, %v1054
        %v1217 = vsel %vm1201, 1, 0
        %v1218 = vsel %vm1202, 1, 0
        %v1219 = vsel %vm1203, 1, 0
        %v1220 = vsel %vm1204, 1, 0
        %v1221 = vsel %vm1205, 1, 0
        %v1222 = vsel %vm1206, 1, 0
        %v1223 = vsel %vm1207, 1, 0
        %v1224 = vsel %vm1208, 1, 0
        %v1225 = vsel %vm1209, 1, 0
        %v1226 = vsel %vm1210, 1, 0
        %v1227 = vsel %vm1211, 1, 0
        %v1228 = vsel %vm1212, 1, 0
        %v1229 = vsel %vm1213, 1, 0
        %v1230 = vsel %vm1214, 1, 0
        %v1231 = vsel %vm1215, 1, 0
        %v1232 = vsel %vm1216, 1, 0
        %vm1233 = vcmask 7168
        %1234 = vst.msk [vmem:[%s419] sm:$0xff] %vm1233, %v1217
        %1235 = vst.msk [vmem:[%s419 + $0x8] sm:$0xff] %vm1233, %v1218
        %1236 = vst.msk [vmem:[%s419 + $0x10] sm:$0xff] %vm1233, %v1219
        %1237 = vst.msk [vmem:[%s419 + $0x18] sm:$0xff] %vm1233, %v1220
        %1238 = vst.msk [vmem:[%s419 + $0x20] sm:$0xff] %vm1233, %v1221
        %1239 = vst.msk [vmem:[%s419 + $0x28] sm:$0xff] %vm1233, %v1222
        %1240 = vst.msk [vmem:[%s419 + $0x30] sm:$0xff] %vm1233, %v1223
        %1241 = vst.msk [vmem:[%s419 + $0x38] sm:$0xff] %vm1233, %v1224
        %1242 = vst.msk [vmem:[%s419 + $0x40] sm:$0xff] %vm1233, %v1225
        %1243 = vst.msk [vmem:[%s419 + $0x48] sm:$0xff] %vm1233, %v1226
        %1244 = vst.msk [vmem:[%s419 + $0x50] sm:$0xff] %vm1233, %v1227
        %1245 = vst.msk [vmem:[%s419 + $0x58] sm:$0xff] %vm1233, %v1228
        %1246 = vst.msk [vmem:[%s419 + $0x60] sm:$0xff] %vm1233, %v1229
        %1247 = vst.msk [vmem:[%s419 + $0x68] sm:$0xff] %vm1233, %v1230
        %1248 = vst.msk [vmem:[%s419 + $0x70] sm:$0xff] %vm1233, %v1231
        %1249 = vst.msk [vmem:[%s419 + $0x78] sm:$0xff] %vm1233, %v1232
        %s1250 = smul.u32 16, %s22
        %p1251 = scmp.lt.s32.totalorder %s1250, 31
        %s1252 = scalar_select %p1251, %s1250, 31
        %s1253 = smul.addr %s1252, 8
        %s1254 = scalar_lea.vmem %s10, %s1253
        // Predicated region
        $region65: #{tpu_custom_call.1} parent=59 // pred_check
          %p1255 = pneg %p265
        $region66: #{tpu_custom_call.1} parent=59 // pred_check_branch
          %1257 = sbr.rel (%p1255) target = $region68
        $region67: #{tpu_custom_call.1} parent=59 // pred_region
          %s1258 = smul.u32 16, %s22
        $region68: #{tpu_custom_call.1} parent=59 // pred_fallthru
          _
      $region60: #{tpu_custom_call.1} parent=5 // pred_fallthru
        _
      %p1259 = scmp.le.s32.totalorder 2, %s17
      // Predicated region
      $region69: #{tpu_custom_call.1} parent=5 // pred_check
        %p1260 = pneg %p1259
      $region70: #{tpu_custom_call.1} parent=5 // pred_check_branch
        %1262 = sbr.rel (%p1260) target = $region72
      $region71: #{tpu_custom_call.1} parent=5 // pred_region
        %s1263 = ssub.s32 %s17, 2
        // Predicated region
        $region73: #{tpu_custom_call.1} parent=71 // pred_check
          %p1264 = pneg %p271
        $region74: #{tpu_custom_call.1} parent=71 // pred_check_branch
          %1266 = sbr.rel (%p1264) target = $region76
        $region75: #{tpu_custom_call.1} parent=71 // pred_region
          %s1267 = smul.u32 16, %s23
          %p1268 = scmp.lt.s32.totalorder %s1267, 31
          %s1269 = scalar_select %p1268, %s1267, 31
          %s1270 = smul.addr %s1269, 8
          %s1271 = scalar_lea.vmem %s10, %s1270
        $region76: #{tpu_custom_call.1} parent=71 // pred_fallthru
          _
      $region72: #{tpu_custom_call.1} parent=5 // pred_fallthru
        _
    $region6: #{tpu_custom_call.1} parent=1 // loop_footer
      %s21 = sadd.s32 1, %s17
    $region7: #{tpu_custom_call.1} parent=1 // loop_footer_branch
      %16 = sbr.rel target = $region3
    $region8: #{tpu_custom_call.1} parent=1 // loop_exit
      _
    %1272 = vsyncpa [#allocation3], 1
    %s1273 = scalar_lea.sflag [#allocation3], 1
    %1274 = vsyncpa %s1273, 1

</llo_original>
